<compile_context>
chip_gen: v5e
topology: v5e:2x2
jax: 0.10.0
libtpu: 0.0.40
codegen_flags: <defaults>
</compile_context>

<pallas_src>
import math

import jax
import jax.numpy as jnp
from jax.experimental import pallas as pl
from jax.experimental.pallas import tpu as pltpu


def dqn_kernel(x_ref, w1t_ref, b1_ref, w2t_ref, b2_ref, w3_ref, b3_ref, o_ref):
    # x: (TB, 4)   w1t: (4, 64)  b1: (1, 64)  w2t: (64, 64)  b2: (1, 64)
    # w3: (1, 64)  b3: (1, 1)    o: (TB, 1)
    x = x_ref[...]                                   # (TB, 4) f32
    w1t = w1t_ref[...]                               # (4, 64)

    # Layer 1 (K=4): four broadcast FMAs on the VPU; bias folded into the
    # first term.  (TB,1)*(1,64) broadcasts are the standard softmax-style
    # lane/sublane broadcast pattern.
    h1 = b1_ref[...] + x[:, 0:1] * w1t[0:1, :]       # (TB, 64)
    for k in range(1, 4):
        h1 = h1 + x[:, k:k + 1] * w1t[k:k + 1, :]
    h1 = jnp.maximum(h1, 0.0)

    # Layer 2 (64x64): MXU matmul, f32 accumulate; bias add / ReLU on VPU.
    h2 = jnp.dot(h1, w2t_ref[...], preferred_element_type=jnp.float32)
    h2 = jnp.maximum(h2 + b2_ref[...], 0.0)          # (TB, 64)

    # Layer 3 (64 -> 1): elementwise mul + cross-lane reduce (XLU slot),
    # then bias.  Output block is (TB, 1), written directly as (B, 1).
    out = jnp.sum(h2 * w3_ref[...], axis=-1, keepdims=True) + b3_ref[...]
    o_ref[...] = out.astype(o_ref.dtype)


def _round_up(n, m):
    return (n + m - 1) // m * m


def _batch_tile(B, block_b):
    """Batch rows per grid step (multiple of 8, sublane-aligned)."""
    TB = min(block_b, _round_up(B, 8))
    # Keep >=2 grid steps when there is enough work so both of v7x's
    # TensorCores get a share under dimension_semantics=("parallel",).
    # On v5e/v6e (single TC) the extra step costs one ~0.35us iteration.
    if B >= 512:
        TB = min(TB, _round_up(pl.cdiv(B, 2), 8))
    return TB


def dqn_forward(x, params, *, block_b=4096):
    """x: (B, 4) float32 -> (B, 1) float32.

    Note: for tiny serving batches (B in the tens) the pallas_call fixed
    cost dominates; callers that care should batch many candidate
    placements per call or use a plain fused XLA MLP below a threshold.
    """
    w1, b1, w2, b2, w3, b3 = params                  # PyTorch (out, in) weights
    B, F = x.shape
    assert F == 4 and block_b % 8 == 0

    TB = _batch_tile(B, block_b)
    grid = (pl.cdiv(B, TB),)

    # Tiny one-off re-layouts of the (VMEM-resident) parameters only; the
    # batch-sized input x is consumed as-is -- no transpose/pad HBM passes.
    w1t = jnp.transpose(w1)                          # (4, 64)
    w2t = jnp.transpose(w2)                          # (64, 64)
    b1r = jnp.reshape(b1, (1, 64))
    b2r = jnp.reshape(b2, (1, 64))
    w3r = jnp.reshape(w3, (1, 64))
    b3r = jnp.reshape(b3, (1, 1))

    flops = 2 * B * (4 * 64 + 64 * 64 + 64 * 1)
    bytes_accessed = (
        x.size * x.dtype.itemsize
        + sum(p.size * p.dtype.itemsize for p in (w1t, b1r, w2t, b2r, w3r, b3r))
        + B * 4
    )

    # Constant index_map -> weight/bias blocks fetched once, VMEM-resident.
    const = lambda shape: pl.BlockSpec(shape, lambda i: (0, 0))

    return pl.pallas_call(
        dqn_kernel,
        out_shape=jax.ShapeDtypeStruct((B, 1), jnp.float32),
        grid=grid,
        in_specs=[
            pl.BlockSpec((TB, 4), lambda i: (i, 0)),  # pipelined input tiles
            const((4, 64)), const((1, 64)),           # layer-1 params
            const((64, 64)), const((1, 64)),          # layer-2 params
            const((1, 64)), const((1, 1)),            # layer-3 params
        ],
        out_specs=pl.BlockSpec((TB, 1), lambda i: (i, 0)),
        compiler_params=pltpu.CompilerParams(
            dimension_semantics=("parallel",),        # megacore on v7x
            vmem_limit_bytes=32 * 1024 * 1024,        # safe on v5e/v6e/v7x
        ),
        cost_estimate=pl.CostEstimate(
            flops=flops, transcendentals=0, bytes_accessed=bytes_accessed),
    )(x, w1t, b1r, w2t, b2r, w3r, b3r)


def xavier_uniform(key, fan_out, fan_in):
    # Matches torch.nn.init.xavier_uniform_ (gain=1): U(-a, a),
    # a = sqrt(6 / (fan_in + fan_out)).  Stored in PyTorch (out, in) layout.
    bound = math.sqrt(6.0 / (fan_in + fan_out))
    return jax.random.uniform(
        key, (fan_out, fan_in), dtype=jnp.float32, minval=-bound, maxval=bound
    )


def make_params(key):
    k1, k2, k3 = jax.random.split(key, 3)
    w1 = xavier_uniform(k1, 64, 4)                   # Linear(4, 64)
    b1 = jnp.zeros((64,), jnp.float32)               # nn.init.constant_(bias, 0)
    w2 = xavier_uniform(k2, 64, 64)                  # Linear(64, 64)
    b2 = jnp.zeros((64,), jnp.float32)
    w3 = xavier_uniform(k3, 1, 64)                   # Linear(64, 1)
    b3 = jnp.zeros((1,), jnp.float32)
    return (w1, b1, w2, b2, w3, b3)


def dqn_forward_ref(x, params):
    w1, b1, w2, b2, w3, b3 = params
    h1 = jnp.maximum(x @ w1.T + b1, 0.0)
    h2 = jnp.maximum(h1 @ w2.T + b2, 0.0)
    return h2 @ w3.T + b3


if __name__ == "__main__":
    key = jax.random.PRNGKey(0)
    pkey, xkey, xkey2 = jax.random.split(key, 3)

    params = make_params(pkey)

    # Small batch of Tetris state features (lines, holes, bumpiness, height).
    x = jax.random.uniform(xkey, (8, 4), dtype=jnp.float32)
    out = jax.block_until_ready(dqn_forward(x, params))
    ref = dqn_forward_ref(x, params)
    assert out.shape == (8, 1), out.shape
    assert jnp.allclose(out, ref, atol=1e-5, rtol=1e-5), "small-batch mismatch"

    # Larger batch: exercises a >=2-step grid (megacore-parallel batch axis
    # on v7x) plus a ragged, Pallas-masked last tile (1000 = 504 + 496).
    xb = jax.random.uniform(xkey2, (1000, 4), dtype=jnp.float32)
    outb = jax.block_until_ready(dqn_forward(xb, params))
    refb = dqn_forward_ref(xb, params)
    assert outb.shape == (1000, 1), outb.shape
    assert jnp.allclose(outb, refb, atol=1e-5, rtol=1e-5), "batched mismatch"

    print("KERNEL_OK")
</pallas_src>

<mosaic_0001>
module attributes {stable_mosaic.version = 11 : i64} {
  func.func @dqn_kernel(%arg0: i32, %arg1: memref<8x4xf32, #tpu.memory_space<vmem>>, %arg2: memref<4x64xf32, #tpu.memory_space<vmem>>, %arg3: memref<1x64xf32, #tpu.memory_space<vmem>>, %arg4: memref<64x64xf32, #tpu.memory_space<vmem>>, %arg5: memref<1x64xf32, #tpu.memory_space<vmem>>, %arg6: memref<1x64xf32, #tpu.memory_space<vmem>>, %arg7: memref<1x1xf32, #tpu.memory_space<vmem>>, %arg8: memref<8x1xf32, #tpu.memory_space<vmem>>) attributes {dimension_semantics = [#tpu.dimension_semantics<parallel>], iteration_bounds = array<i64: 1>, scalar_prefetch = 0 : i64, scratch_operands = 0 : i64, tpu.core_type = #tpu.core_type<tc>, window_params = [{transform_indices = @transform_0, window_bounds = array<i64: 8, 4>}, {pipeline_mode = #tpu.pipeline_mode<synchronous>, transform_indices = @transform_1, window_bounds = array<i64: 4, 64>}, {pipeline_mode = #tpu.pipeline_mode<synchronous>, transform_indices = @transform_2, window_bounds = array<i64: 1, 64>}, {pipeline_mode = #tpu.pipeline_mode<synchronous>, transform_indices = @transform_3, window_bounds = array<i64: 64, 64>}, {pipeline_mode = #tpu.pipeline_mode<synchronous>, transform_indices = @transform_4, window_bounds = array<i64: 1, 64>}, {pipeline_mode = #tpu.pipeline_mode<synchronous>, transform_indices = @transform_5, window_bounds = array<i64: 1, 64>}, {pipeline_mode = #tpu.pipeline_mode<synchronous>, transform_indices = @transform_6, window_bounds = array<i64: 1, 1>}, {transform_indices = @transform_7, window_bounds = array<i64: 8, 1>}]} {
    %c0 = arith.constant 0 : index
    %c0_0 = arith.constant 0 : index
    %0 = vector.load %arg1[%c0, %c0_0] : memref<8x4xf32, #tpu.memory_space<vmem>>, vector<8x4xf32>
    %c0_1 = arith.constant 0 : index
    %c0_2 = arith.constant 0 : index
    %1 = vector.load %arg2[%c0_1, %c0_2] : memref<4x64xf32, #tpu.memory_space<vmem>>, vector<4x64xf32>
    %c0_3 = arith.constant 0 : index
    %c0_4 = arith.constant 0 : index
    %2 = vector.load %arg3[%c0_3, %c0_4] : memref<1x64xf32, #tpu.memory_space<vmem>>, vector<1x64xf32>
    %3 = vector.extract_strided_slice %0 {offsets = [0, 0], sizes = [8, 1], strides = [1, 1]} : vector<8x4xf32> to vector<8x1xf32>
    %4 = vector.extract_strided_slice %1 {offsets = [0, 0], sizes = [1, 64], strides = [1, 1]} : vector<4x64xf32> to vector<1x64xf32>
    %5 = vector.broadcast %3 : vector<8x1xf32> to vector<8x64xf32>
    %6 = vector.broadcast %4 : vector<1x64xf32> to vector<8x64xf32>
    %7 = arith.mulf %5, %6 : vector<8x64xf32>
    %8 = vector.broadcast %2 : vector<1x64xf32> to vector<8x64xf32>
    %9 = arith.addf %8, %7 : vector<8x64xf32>
    %10 = vector.extract_strided_slice %0 {offsets = [0, 1], sizes = [8, 1], strides = [1, 1]} : vector<8x4xf32> to vector<8x1xf32>
    %11 = vector.extract_strided_slice %1 {offsets = [1, 0], sizes = [1, 64], strides = [1, 1]} : vector<4x64xf32> to vector<1x64xf32>
    %12 = vector.broadcast %10 : vector<8x1xf32> to vector<8x64xf32>
    %13 = vector.broadcast %11 : vector<1x64xf32> to vector<8x64xf32>
    %14 = arith.mulf %12, %13 : vector<8x64xf32>
    %15 = arith.addf %9, %14 : vector<8x64xf32>
    %16 = vector.extract_strided_slice %0 {offsets = [0, 2], sizes = [8, 1], strides = [1, 1]} : vector<8x4xf32> to vector<8x1xf32>
    %17 = vector.extract_strided_slice %1 {offsets = [2, 0], sizes = [1, 64], strides = [1, 1]} : vector<4x64xf32> to vector<1x64xf32>
    %18 = vector.broadcast %16 : vector<8x1xf32> to vector<8x64xf32>
    %19 = vector.broadcast %17 : vector<1x64xf32> to vector<8x64xf32>
    %20 = arith.mulf %18, %19 : vector<8x64xf32>
    %21 = arith.addf %15, %20 : vector<8x64xf32>
    %22 = vector.extract_strided_slice %0 {offsets = [0, 3], sizes = [8, 1], strides = [1, 1]} : vector<8x4xf32> to vector<8x1xf32>
    %23 = vector.extract_strided_slice %1 {offsets = [3, 0], sizes = [1, 64], strides = [1, 1]} : vector<4x64xf32> to vector<1x64xf32>
    %24 = vector.broadcast %22 : vector<8x1xf32> to vector<8x64xf32>
    %25 = vector.broadcast %23 : vector<1x64xf32> to vector<8x64xf32>
    %26 = arith.mulf %24, %25 : vector<8x64xf32>
    %27 = arith.addf %21, %26 : vector<8x64xf32>
    %cst = arith.constant 0.000000e+00 : f32
    %28 = vector.broadcast %cst : f32 to vector<8x64xf32>
    %29 = arith.maximumf %27, %28 : vector<8x64xf32>
    %c0_5 = arith.constant 0 : index
    %c0_6 = arith.constant 0 : index
    %30 = vector.load %arg4[%c0_5, %c0_6] : memref<64x64xf32, #tpu.memory_space<vmem>>, vector<64x64xf32>
    %cst_7 = arith.constant dense<0.000000e+00> : vector<8x64xf32>
    %31 = tpu.matmul %29, %30, %cst_7 {dimension_numbers = #tpu.dot_dimension_numbers<[1], [0], [0], [1], [0, 0, 1, 1], [], []>} : vector<8x64xf32>, vector<64x64xf32>, vector<8x64xf32> -> vector<8x64xf32>
    %c0_8 = arith.constant 0 : index
    %c0_9 = arith.constant 0 : index
    %32 = vector.load %arg5[%c0_8, %c0_9] : memref<1x64xf32, #tpu.memory_space<vmem>>, vector<1x64xf32>
    %33 = vector.broadcast %32 : vector<1x64xf32> to vector<8x64xf32>
    %34 = arith.addf %31, %33 : vector<8x64xf32>
    %cst_10 = arith.constant 0.000000e+00 : f32
    %35 = vector.broadcast %cst_10 : f32 to vector<8x64xf32>
    %36 = arith.maximumf %34, %35 : vector<8x64xf32>
    %c0_11 = arith.constant 0 : index
    %c0_12 = arith.constant 0 : index
    %37 = vector.load %arg6[%c0_11, %c0_12] : memref<1x64xf32, #tpu.memory_space<vmem>>, vector<1x64xf32>
    %38 = vector.broadcast %37 : vector<1x64xf32> to vector<8x64xf32>
    %39 = arith.mulf %36, %38 : vector<8x64xf32>
    %cst_13 = arith.constant dense<0.000000e+00> : vector<8xf32>
    %40 = vector.multi_reduction <add>, %39, %cst_13 [1] : vector<8x64xf32> to vector<8xf32>
    %41 = vector.shape_cast %40 : vector<8xf32> to vector<8x1xf32>
    %c0_14 = arith.constant 0 : index
    %c0_15 = arith.constant 0 : index
    %42 = vector.load %arg7[%c0_14, %c0_15] : memref<1x1xf32, #tpu.memory_space<vmem>>, vector<1x1xf32>
    %43 = vector.broadcast %42 : vector<1x1xf32> to vector<8x1xf32>
    %44 = arith.addf %41, %43 : vector<8x1xf32>
    %c0_16 = arith.constant 0 : index
    %c0_17 = arith.constant 0 : index
    %45 = vector.load %arg8[%c0_16, %c0_17] : memref<8x1xf32, #tpu.memory_space<vmem>>, vector<8x1xf32>
    tpu.vector_store %arg8[%c0_16, %c0_17], %44 {strides = array<i32>} : memref<8x1xf32, #tpu.memory_space<vmem>>, vector<8x1xf32>,
    return
  }
  func.func @transform_0(%arg0: i32) -> (i32, i32) {
    %c0_i32 = arith.constant 0 : i32
    %c0_i32_0 = arith.constant 0 : i32
    return %arg0, %c0_i32 : i32, i32
  }
  func.func @transform_1(%arg0: i32) -> (i32, i32) {
    %c0_i32 = arith.constant 0 : i32
    %c0_i32_0 = arith.constant 0 : i32
    %c0_i32_1 = arith.constant 0 : i32
    return %c0_i32, %c0_i32_0 : i32, i32
  }
  func.func @transform_2(%arg0: i32) -> (i32, i32) {
    %c0_i32 = arith.constant 0 : i32
    %c0_i32_0 = arith.constant 0 : i32
    %c0_i32_1 = arith.constant 0 : i32
    return %c0_i32, %c0_i32_0 : i32, i32
  }
  func.func @transform_3(%arg0: i32) -> (i32, i32) {
    %c0_i32 = arith.constant 0 : i32
    %c0_i32_0 = arith.constant 0 : i32
    %c0_i32_1 = arith.constant 0 : i32
    return %c0_i32, %c0_i32_0 : i32, i32
  }
  func.func @transform_4(%arg0: i32) -> (i32, i32) {
    %c0_i32 = arith.constant 0 : i32
    %c0_i32_0 = arith.constant 0 : i32
    %c0_i32_1 = arith.constant 0 : i32
    return %c0_i32, %c0_i32_0 : i32, i32
  }
  func.func @transform_5(%arg0: i32) -> (i32, i32) {
    %c0_i32 = arith.constant 0 : i32
    %c0_i32_0 = arith.constant 0 : i32
    %c0_i32_1 = arith.constant 0 : i32
    return %c0_i32, %c0_i32_0 : i32, i32
  }
  func.func @transform_6(%arg0: i32) -> (i32, i32) {
    %c0_i32 = arith.constant 0 : i32
    %c0_i32_0 = arith.constant 0 : i32
    %c0_i32_1 = arith.constant 0 : i32
    return %c0_i32, %c0_i32_0 : i32, i32
  }
  func.func @transform_7(%arg0: i32) -> (i32, i32) {
    %c0_i32 = arith.constant 0 : i32
    %c0_i32_0 = arith.constant 0 : i32
    return %arg0, %c0_i32 : i32, i32
  }
}

</mosaic_0001>

<llo_original>
// kernel: tpu_custom_call.1
$region0: #{tpu_custom_call.1}
  #allocation0 [shape = 'u32[]', space=smem, size = 0x4, offset = 0x4, fixed_abs, tag = 'smem constant byte address 0x4 - core index']
  #allocation1 [shape = 'u32[72,128]{1,0:T(1,128)}', space=vmem, size = 0x9000, scoped, tag = 'internal scratch']
  #allocation2 [shape = 'f32[1,1]{1,0:T(1,128)S(1)}', space=vmem, size = 0x200, scoped, tag = 'scoped memory for tpu_custom_call.1']
  %s0 = inlined_call_operand.vmem [shape: f32[8,4], index: 0, kind: input, shape index: {}]
  %s1 = inlined_call_operand.vmem [shape: f32[4,64], index: 1, kind: input, shape index: {}]
  %s2 = inlined_call_operand.vmem [shape: f32[1,64], index: 2, kind: input, shape index: {}]
  %s3 = inlined_call_operand.hbm [shape: f32[64,64], index: 3, kind: input, shape index: {}]
  %s4 = inlined_call_operand.vmem [shape: f32[1,64], index: 4, kind: input, shape index: {}]
  %s5 = inlined_call_operand.vmem [shape: f32[1,64], index: 5, kind: input, shape index: {}]
  %s6 = inlined_call_operand.<no memory space> [shape: f32[1,1], index: 6, kind: input, shape index: {}]
  %s7 = inlined_call_operand.vmem [shape: f32[8,1], index: 7, kind: output, shape index: {}]
  %s8 = sld [smem:[#allocation0]]
  $region42: #{tpu_custom_call.1} parent=0
    _
  %s10 = ssub.s32 1, %s8
  %s11 = scalar_select 0, %s10, %s8
  %v12 = vstv %s6
  %13 = vst [vmem:[#allocation2] sm:$0x1] %v12
  $region1: #{tpu_custom_call.1} parent=0
    #allocation3 [shape = 'u8[32768]{0}', space=vmem, size = 0x8000, scoped, tag = 'input window, operand 3, single buffered']
    #allocation4 [shape = 's32[1]{0}', space=sflag, size = 0x4, scoped, tag = 'scoped memory for tpu_custom_call.1']
    %14 = vsyncpa [#allocation4], 0
    // Predicated region
    $region2: #{tpu_custom_call.1} parent=1 // pred_check
      _
    $region3: #{tpu_custom_call.1} parent=1 // pred_check_branch
      %16 = sbr.rel (0) target = $region5
    $region4: #{tpu_custom_call.1} parent=1 // pred_region
      _
    $region5: #{tpu_custom_call.1} parent=1 // pred_fallthru
      _
    // Predicated region
    $region6: #{tpu_custom_call.1} parent=1 // pred_check
      _
    $region7: #{tpu_custom_call.1} parent=1 // pred_check_branch
      %18 = sbr.rel (0) target = $region9
    $region8: #{tpu_custom_call.1} parent=1 // pred_region
      _
    $region9: #{tpu_custom_call.1} parent=1 // pred_fallthru
      _
    // Predicated region
    $region10: #{tpu_custom_call.1} parent=1 // pred_check
      _
    $region11: #{tpu_custom_call.1} parent=1 // pred_check_branch
      %20 = sbr.rel (0) target = $region13
    $region12: #{tpu_custom_call.1} parent=1 // pred_region
      _
    $region13: #{tpu_custom_call.1} parent=1 // pred_fallthru
      _
    // Predicated region
    $region14: #{tpu_custom_call.1} parent=1 // pred_check
      _
    $region15: #{tpu_custom_call.1} parent=1 // pred_check_branch
      %22 = sbr.rel (0) target = $region17
    $region16: #{tpu_custom_call.1} parent=1 // pred_region
      %24 = vsyncadd [#allocation4], 0
      %s25 = sshll.u32 %s3, 4
      %s26 = int_to_ptr.hbm [resolvable:$true] %s25
      %s27 = sshll.u32 [#allocation3], 4
      %s28 = int_to_ptr.vmem [resolvable:$true] %s27
      %33 = dma.hbm_to_vmem [thread:$0]  %s26, 1024, %s28, [#allocation4], 128, 128, 8
    $region17: #{tpu_custom_call.1} parent=1 // pred_fallthru
      _
    // Predicated region
    $region18: #{tpu_custom_call.1} parent=1 // pred_check
      _
    $region19: #{tpu_custom_call.1} parent=1 // pred_check_branch
      %35 = sbr.rel (0) target = $region21
    $region20: #{tpu_custom_call.1} parent=1 // pred_region
      _
    $region21: #{tpu_custom_call.1} parent=1 // pred_fallthru
      _
    // Predicated region
    $region22: #{tpu_custom_call.1} parent=1 // pred_check
      _
    $region23: #{tpu_custom_call.1} parent=1 // pred_check_branch
      %37 = sbr.rel (0) target = $region25
    $region24: #{tpu_custom_call.1} parent=1 // pred_region
      _
    $region25: #{tpu_custom_call.1} parent=1 // pred_fallthru
      _
    // Predicated region
    $region26: #{tpu_custom_call.1} parent=1 // pred_check
      _
    $region27: #{tpu_custom_call.1} parent=1 // pred_check_branch
      %39 = sbr.rel (0) target = $region29
    $region28: #{tpu_custom_call.1} parent=1 // pred_region
      _
    $region29: #{tpu_custom_call.1} parent=1 // pred_fallthru
      _
    // Predicated region
    $region30: #{tpu_custom_call.1} parent=1 // pred_check
      _
    $region31: #{tpu_custom_call.1} parent=1 // pred_check_branch
      %41 = sbr.rel (0) target = $region33
    $region32: #{tpu_custom_call.1} parent=1 // pred_region
      %43 = dma.done [#allocation4], 1024
    $region33: #{tpu_custom_call.1} parent=1 // pred_fallthru
      _
    %v44 = vld [vmem:[%s0] sm:$0xff]
    %v45 = vld [vmem:[%s1] sm:$0xf]
    %v46 = vld [vmem:[%s2] sm:$0x1]
    %48 = vset.pattern.permute.xlu0 0
    %49 = vperm.xlu0 %48, %v44
    %v50 = vpop.permute.xlu0 %49
    %v52 = vperm.slane %v45, 0
    %v53 = vmul.f32 %v50, %v52
    %v55 = vperm.slane %v46, 0
    %v57 = vadd.f32 %v55, %v53
    %58 = vset.pattern.permute.xlu0 1
    %59 = vperm.xlu0 %58, %v44
    %v60 = vpop.permute.xlu0 %59
    %v62 = vperm.slane %v45, 1
    %v63 = vmul.f32 %v60, %v62
    %v64 = vadd.f32 %v57, %v63
    %65 = vset.pattern.permute.xlu0 2
    %66 = vperm.xlu0 %65, %v44
    %v67 = vpop.permute.xlu0 %66
    %v69 = vperm.slane %v45, 2
    %v70 = vmul.f32 %v67, %v69
    %v71 = vadd.f32 %v64, %v70
    %72 = vset.pattern.permute.xlu0 3
    %73 = vperm.xlu0 %72, %v44
    %v74 = vpop.permute.xlu0 %73
    %v76 = vperm.slane %v45, 3
    %v77 = vmul.f32 %v74, %v76
    %v78 = vadd.f32 %v71, %v77
    %v79 = vmax.f32 %v78, 0.0
    %v80 = vld [vmem:[#allocation3] sm:$0xff]
    %v81 = vld [vmem:[#allocation3 + $0x8] sm:$0xff]
    %v82 = vld [vmem:[#allocation3 + $0x10] sm:$0xff]
    %v83 = vld [vmem:[#allocation3 + $0x18] sm:$0xff]
    %v84 = vld [vmem:[#allocation3 + $0x20] sm:$0xff]
    %v85 = vld [vmem:[#allocation3 + $0x28] sm:$0xff]
    %v86 = vld [vmem:[#allocation3 + $0x30] sm:$0xff]
    %v87 = vld [vmem:[#allocation3 + $0x38] sm:$0xff]
    %v88 = vld [vmem:[%s4] sm:$0x1]
    %v90 = vperm.slane %v88, 0
    %vm92 = vcmask 523264
    %v94 = vsel %vm92, %v79, 0
    %96 = vmatpush.msra.mxu0 0.0
    %97 = vmatpush.msra.mxu0 0.0
    %98 = vmatpush.msra.mxu0 0.0
    %99 = vmatpush.msra.mxu0 0.0
    %100 = vmatpush.msra.mxu0 0.0
    %101 = vmatpush.msra.mxu0 0.0
    %102 = vmatpush.msra.mxu0 0.0
    %103 = vmatpush.msra.mxu0 0.0
    %104 = vmatpush.msra.mxu0 %v87
    %105 = vmatpush.msra.mxu0 %v86
    %106 = vmatpush.msra.mxu0 %v85
    %107 = vmatpush.msra.mxu0 %v84
    %108 = vmatpush.msra.mxu0 %v83
    %109 = vmatpush.msra.mxu0 %v82
    %110 = vmatpush.msra.mxu0 %v81
    %111 = vmatpush.msra.mxu0 %v80
    %112 = vmatmul.f32.gmra.mxu0 %v94
    %v113 = vpop.f32.mrf.mxu0
    %v114 = vadd.f32 %v90, %v113
    %115 = vdwg.mxu0
    %v116 = vmax.f32 %v114, 0.0
    %v117 = vld [vmem:[%s5] sm:$0x1]
    %v119 = vperm.slane %v117, 0
    %v121 = vmul.f32 %v116, %v119
    %v122 = vsel %vm92, %v121, 0.0
    %123 = vadd.xlane.f32.xlu0 %v122
    %v124 = vpop.xlane.xlu0 %123
    %v125 = vld [vmem:[#allocation2] sm:$0x1]
    %v127 = vperm.slane %v125, 0
    %v129 = vadd.f32 %v124, %v127
    %vm130 = vcmask 7168
    %131 = vst.msk [vmem:[%s7] sm:$0xff] %vm130, %v129
    // Predicated region
    $region34: #{tpu_custom_call.1} parent=1 // pred_check
      _
    $region35: #{tpu_custom_call.1} parent=1 // pred_check_branch
      %133 = sbr.rel (0) target = $region37
    $region36: #{tpu_custom_call.1} parent=1 // pred_region
      _
    $region37: #{tpu_custom_call.1} parent=1 // pred_fallthru
      _
    // Predicated region
    $region38: #{tpu_custom_call.1} parent=1 // pred_check
      _
    $region39: #{tpu_custom_call.1} parent=1 // pred_check_branch
      %135 = sbr.rel (0) target = $region41
    $region40: #{tpu_custom_call.1} parent=1 // pred_region
      _
    $region41: #{tpu_custom_call.1} parent=1 // pred_fallthru
      _
    %136 = vsyncpa [#allocation4], 1

</llo_original>
